<compile_context>
chip_gen: v7x
topology: tpu7x:2x2x1
jax: 0.10.0
libtpu: 0.0.40
codegen_flags: <defaults>
</compile_context>

<pallas_src>
import jax
import jax.numpy as jnp
from jax.experimental import pallas as pl
from jax.experimental.pallas import tpu as pltpu

INPUT_SIZE = 270
HIDDEN_SIZE = 64
OUTPUT_SIZE = 30


def mlp_kernel(x_ref, w1_ref, b1_ref, w2_ref, b2_ref, o_ref):
    # fc1: [TB, 270] @ [270, 64] on the MXU, f32 accumulation; bias + ReLU on
    # the VPU in f32.
    h = jnp.dot(x_ref[...], w1_ref[...], preferred_element_type=jnp.float32)
    h = jnp.maximum(h + b1_ref[...], 0.0)
    # fc2: cast activations to the weight dtype so bf16 weights keep the fast
    # bf16 MXU path (no-op when everything is f32); accumulate in f32.
    o = jnp.dot(h.astype(w2_ref.dtype), w2_ref[...],
                preferred_element_type=jnp.float32)
    o_ref[...] = (o + b2_ref[...]).astype(o_ref.dtype)


def mlp_forward(x, w1, b1, w2, b2, *, block_b=2048, vmem_limit_bytes=None):
    """Batch-tiled MLP forward.

    block_b: rows of x per grid step (multiple of 8). 2048 f32 rows is ~2.2 MiB
    per x buffer (~4.4 MiB double-buffered) -> safe under every generation's
    default scoped-VMEM limit while keeping per-step grid overhead negligible.
    For very large batches you can raise it further with vmem_limit_bytes
    (budget against 64 MiB physical VMEM on v7x, 128 MiB on v5e/v6e).
    """
    B = x.shape[0]
    # If B is smaller than the tile, fall back to a full-array block (the
    # "block == full array dims" escape hatch of the (8,128) rule), which also
    # keeps arbitrary/ragged small batches legal. Otherwise tb is a multiple
    # of 8; a ragged last tile is handled by Pallas' masked output stores.
    tb = B if B <= block_b else block_b
    grid = (pl.cdiv(B, tb),)

    out_dtype = x.dtype  # match PyTorch: output dtype follows the input

    x_bytes = jnp.dtype(x.dtype).itemsize
    w_bytes = jnp.dtype(w1.dtype).itemsize
    o_bytes = jnp.dtype(out_dtype).itemsize
    cost = pl.CostEstimate(
        flops=2 * B * (INPUT_SIZE * HIDDEN_SIZE + HIDDEN_SIZE * OUTPUT_SIZE),
        bytes_accessed=(B * INPUT_SIZE * x_bytes
                        + B * OUTPUT_SIZE * o_bytes
                        + (INPUT_SIZE * HIDDEN_SIZE
                           + HIDDEN_SIZE * OUTPUT_SIZE) * w_bytes
                        + (HIDDEN_SIZE + OUTPUT_SIZE) * 4),
        transcendentals=0,
    )

    return pl.pallas_call(
        mlp_kernel,
        out_shape=jax.ShapeDtypeStruct((B, OUTPUT_SIZE), out_dtype),
        grid=grid,
        in_specs=[
            # x streams through VMEM, one batch tile per grid step (pipelined).
            pl.BlockSpec((tb, INPUT_SIZE), lambda i: (i, 0)),
            # Weights / biases: constant index maps -> resident, not re-DMA'd.
            pl.BlockSpec((INPUT_SIZE, HIDDEN_SIZE), lambda i: (0, 0)),
            pl.BlockSpec((1, HIDDEN_SIZE), lambda i: (0, 0)),
            pl.BlockSpec((HIDDEN_SIZE, OUTPUT_SIZE), lambda i: (0, 0)),
            pl.BlockSpec((1, OUTPUT_SIZE), lambda i: (0, 0)),
        ],
        out_specs=pl.BlockSpec((tb, OUTPUT_SIZE), lambda i: (i, 0)),
        compiler_params=pltpu.CompilerParams(
            # Batch tiles are independent -> shard across both TensorCores on
            # v7x; harmless on single-TC v5e/v6e.
            dimension_semantics=("parallel",),
            vmem_limit_bytes=vmem_limit_bytes,
        ),
        cost_estimate=cost,
    )(x, w1, b1, w2, b2)


def init_params(key):
    # Deterministic init mimicking nn.Linear's U(-1/sqrt(fan_in), 1/sqrt(fan_in))
    k1, k2, k3, k4 = jax.random.split(key, 4)
    bound1 = 1.0 / jnp.sqrt(jnp.float32(INPUT_SIZE))
    bound2 = 1.0 / jnp.sqrt(jnp.float32(HIDDEN_SIZE))
    # store weights as [in, out] (transpose of PyTorch's [out, in])
    w1 = jax.random.uniform(k1, (INPUT_SIZE, HIDDEN_SIZE), jnp.float32,
                            -bound1, bound1)
    b1 = jax.random.uniform(k2, (1, HIDDEN_SIZE), jnp.float32, -bound1, bound1)
    w2 = jax.random.uniform(k3, (HIDDEN_SIZE, OUTPUT_SIZE), jnp.float32,
                            -bound2, bound2)
    b2 = jax.random.uniform(k4, (1, OUTPUT_SIZE), jnp.float32, -bound2, bound2)
    return w1, b1, w2, b2


def reference_forward(x, w1, b1, w2, b2):
    h = jnp.maximum(x @ w1 + b1, 0.0)
    return h @ w2 + b2


if __name__ == "__main__":
    key = jax.random.PRNGKey(0)
    k_params, k_x = jax.random.split(key)
    w1, b1, w2, b2 = init_params(k_params)

    # --- f32 path: exact semantics of the PyTorch module (small batch) ---
    batch = 8
    x = jax.random.normal(k_x, (batch, INPUT_SIZE), jnp.float32)
    out = jax.block_until_ready(mlp_forward(x, w1, b1, w2, b2))
    ref = reference_forward(x, w1, b1, w2, b2)
    assert out.shape == (batch, OUTPUT_SIZE)
    assert out.dtype == jnp.float32
    assert jnp.allclose(out, ref, atol=1e-4, rtol=1e-4)

    # --- multi-tile grid path (exercises batch tiling / pipelining, incl. a
    #     ragged last tile) ---
    batch2 = 72
    x2 = jax.random.normal(jax.random.PRNGKey(1), (batch2, INPUT_SIZE),
                           jnp.float32)
    out2 = jax.block_until_ready(mlp_forward(x2, w1, b1, w2, b2, block_b=16))
    ref2 = reference_forward(x2, w1, b1, w2, b2)
    assert out2.shape == (batch2, OUTPUT_SIZE)
    assert jnp.allclose(out2, ref2, atol=1e-4, rtol=1e-4)

    # --- bf16 streaming path: halves HBM bytes; f32 accumulation/epilogue ---
    xb = x2.astype(jnp.bfloat16)
    w1b = w1.astype(jnp.bfloat16)
    w2b = w2.astype(jnp.bfloat16)
    out3 = jax.block_until_ready(mlp_forward(xb, w1b, b1, w2b, b2, block_b=16))
    ref3 = reference_forward(xb.astype(jnp.float32), w1b.astype(jnp.float32),
                             b1, w2b.astype(jnp.float32), b2)
    assert out3.dtype == jnp.bfloat16
    assert jnp.allclose(out3.astype(jnp.float32), ref3, atol=5e-2, rtol=5e-2)

    print("KERNEL_OK")
</pallas_src>

<mosaic_0001>
module attributes {stable_mosaic.version = 11 : i64} {
  func.func @mlp_kernel(%arg0: i32, %arg1: memref<8x270xf32, #tpu.memory_space<vmem>>, %arg2: memref<270x64xf32, #tpu.memory_space<vmem>>, %arg3: memref<1x64xf32, #tpu.memory_space<vmem>>, %arg4: memref<64x30xf32, #tpu.memory_space<vmem>>, %arg5: memref<1x30xf32, #tpu.memory_space<vmem>>, %arg6: memref<8x30xf32, #tpu.memory_space<vmem>>) attributes {dimension_semantics = [#tpu.dimension_semantics<parallel>], iteration_bounds = array<i64: 1>, scalar_prefetch = 0 : i64, scratch_operands = 0 : i64, tpu.core_type = #tpu.core_type<tc>, window_params = [{transform_indices = @transform_0, window_bounds = array<i64: 8, 270>}, {pipeline_mode = #tpu.pipeline_mode<synchronous>, transform_indices = @transform_1, window_bounds = array<i64: 270, 64>}, {pipeline_mode = #tpu.pipeline_mode<synchronous>, transform_indices = @transform_2, window_bounds = array<i64: 1, 64>}, {pipeline_mode = #tpu.pipeline_mode<synchronous>, transform_indices = @transform_3, window_bounds = array<i64: 64, 30>}, {pipeline_mode = #tpu.pipeline_mode<synchronous>, transform_indices = @transform_4, window_bounds = array<i64: 1, 30>}, {transform_indices = @transform_5, window_bounds = array<i64: 8, 30>}]} {
    %c0 = arith.constant 0 : index
    %c0_0 = arith.constant 0 : index
    %0 = vector.load %arg1[%c0, %c0_0] : memref<8x270xf32, #tpu.memory_space<vmem>>, vector<8x270xf32>
    %c0_1 = arith.constant 0 : index
    %c0_2 = arith.constant 0 : index
    %1 = vector.load %arg2[%c0_1, %c0_2] : memref<270x64xf32, #tpu.memory_space<vmem>>, vector<270x64xf32>
    %cst = arith.constant dense<0.000000e+00> : vector<8x64xf32>
    %2 = tpu.matmul %0, %1, %cst {dimension_numbers = #tpu.dot_dimension_numbers<[1], [0], [0], [1], [0, 0, 1, 1], [], []>} : vector<8x270xf32>, vector<270x64xf32>, vector<8x64xf32> -> vector<8x64xf32>
    %c0_3 = arith.constant 0 : index
    %c0_4 = arith.constant 0 : index
    %3 = vector.load %arg3[%c0_3, %c0_4] : memref<1x64xf32, #tpu.memory_space<vmem>>, vector<1x64xf32>
    %4 = vector.broadcast %3 : vector<1x64xf32> to vector<8x64xf32>
    %5 = arith.addf %2, %4 : vector<8x64xf32>
    %cst_5 = arith.constant 0.000000e+00 : f32
    %6 = vector.broadcast %cst_5 : f32 to vector<8x64xf32>
    %7 = arith.maximumf %5, %6 : vector<8x64xf32>
    %c0_6 = arith.constant 0 : index
    %c0_7 = arith.constant 0 : index
    %8 = vector.load %arg4[%c0_6, %c0_7] : memref<64x30xf32, #tpu.memory_space<vmem>>, vector<64x30xf32>
    %cst_8 = arith.constant dense<0.000000e+00> : vector<8x30xf32>
    %9 = tpu.matmul %7, %8, %cst_8 {dimension_numbers = #tpu.dot_dimension_numbers<[1], [0], [0], [1], [0, 0, 1, 1], [], []>} : vector<8x64xf32>, vector<64x30xf32>, vector<8x30xf32> -> vector<8x30xf32>
    %c0_9 = arith.constant 0 : index
    %c0_10 = arith.constant 0 : index
    %10 = vector.load %arg5[%c0_9, %c0_10] : memref<1x30xf32, #tpu.memory_space<vmem>>, vector<1x30xf32>
    %11 = vector.broadcast %10 : vector<1x30xf32> to vector<8x30xf32>
    %12 = arith.addf %9, %11 : vector<8x30xf32>
    %c0_11 = arith.constant 0 : index
    %c0_12 = arith.constant 0 : index
    %13 = vector.load %arg6[%c0_11, %c0_12] : memref<8x30xf32, #tpu.memory_space<vmem>>, vector<8x30xf32>
    tpu.vector_store %arg6[%c0_11, %c0_12], %12 {strides = array<i32>} : memref<8x30xf32, #tpu.memory_space<vmem>>, vector<8x30xf32>,
    return
  }
  func.func @transform_0(%arg0: i32) -> (i32, i32) {
    %c0_i32 = arith.constant 0 : i32
    %c0_i32_0 = arith.constant 0 : i32
    return %arg0, %c0_i32 : i32, i32
  }
  func.func @transform_1(%arg0: i32) -> (i32, i32) {
    %c0_i32 = arith.constant 0 : i32
    %c0_i32_0 = arith.constant 0 : i32
    %c0_i32_1 = arith.constant 0 : i32
    return %c0_i32, %c0_i32_0 : i32, i32
  }
  func.func @transform_2(%arg0: i32) -> (i32, i32) {
    %c0_i32 = arith.constant 0 : i32
    %c0_i32_0 = arith.constant 0 : i32
    %c0_i32_1 = arith.constant 0 : i32
    return %c0_i32, %c0_i32_0 : i32, i32
  }
  func.func @transform_3(%arg0: i32) -> (i32, i32) {
    %c0_i32 = arith.constant 0 : i32
    %c0_i32_0 = arith.constant 0 : i32
    %c0_i32_1 = arith.constant 0 : i32
    return %c0_i32, %c0_i32_0 : i32, i32
  }
  func.func @transform_4(%arg0: i32) -> (i32, i32) {
    %c0_i32 = arith.constant 0 : i32
    %c0_i32_0 = arith.constant 0 : i32
    %c0_i32_1 = arith.constant 0 : i32
    return %c0_i32, %c0_i32_0 : i32, i32
  }
  func.func @transform_5(%arg0: i32) -> (i32, i32) {
    %c0_i32 = arith.constant 0 : i32
    %c0_i32_0 = arith.constant 0 : i32
    return %arg0, %c0_i32 : i32, i32
  }
}

</mosaic_0001>

<llo_original>
// kernel: tpu_custom_call.1
$region0: #{tpu_custom_call.1}
  #allocation0 [shape = 'u32[]', space=smem, size = 0x4, offset = 0x4, fixed_abs, tag = 'smem constant byte address 0x4 - core index']
  #allocation1 [shape = 'u32[144,128]{1,0:T(1,128)}', space=vmem, size = 0x12000, scoped, tag = 'internal scratch']
  %s0 = inlined_call_operand.vmem [shape: f32[8,270], index: 0, kind: input, shape index: {}]
  %s1 = inlined_call_operand.vmem [shape: f32[270,64], index: 1, kind: input, shape index: {}]
  %s2 = inlined_call_operand.vmem [shape: f32[1,64], index: 2, kind: input, shape index: {}]
  %s3 = inlined_call_operand.vmem [shape: f32[64,30], index: 3, kind: input, shape index: {}]
  %s4 = inlined_call_operand.vmem [shape: f32[1,30], index: 4, kind: input, shape index: {}]
  %s5 = inlined_call_operand.hbm [shape: f32[8,30], index: 5, kind: output, shape index: {}]
  %s6 = sld [smem:[#allocation0]]
  $region30: #{tpu_custom_call.1} parent=0
    _
  %s8 = ssub.s32 1, %s6
  %s9 = scalar_select 0, %s8, %s6
  $region1: #{tpu_custom_call.1} parent=0
    #allocation2 [shape = 'u8[4096]{0}', space=vmem, size = 0x1000, scoped, tag = 'output window, operand 0, single buffered']
    #allocation3 [shape = 's32[1]{0}', space=sflag, size = 0x4, scoped, tag = 'scoped memory for tpu_custom_call.1']
    %10 = vsyncpa [#allocation3], 0
    // Predicated region
    $region2: #{tpu_custom_call.1} parent=1 // pred_check
      _
    $region3: #{tpu_custom_call.1} parent=1 // pred_check_branch
      %12 = sbr.rel (0) target = $region5
    $region4: #{tpu_custom_call.1} parent=1 // pred_region
      _
    $region5: #{tpu_custom_call.1} parent=1 // pred_fallthru
      _
    // Predicated region
    $region6: #{tpu_custom_call.1} parent=1 // pred_check
      _
    $region7: #{tpu_custom_call.1} parent=1 // pred_check_branch
      %14 = sbr.rel (0) target = $region9
    $region8: #{tpu_custom_call.1} parent=1 // pred_region
      _
    $region9: #{tpu_custom_call.1} parent=1 // pred_fallthru
      _
    // Predicated region
    $region10: #{tpu_custom_call.1} parent=1 // pred_check
      _
    $region11: #{tpu_custom_call.1} parent=1 // pred_check_branch
      %16 = sbr.rel (0) target = $region13
    $region12: #{tpu_custom_call.1} parent=1 // pred_region
      _
    $region13: #{tpu_custom_call.1} parent=1 // pred_fallthru
      _
    // Predicated region
    $region14: #{tpu_custom_call.1} parent=1 // pred_check
      _
    $region15: #{tpu_custom_call.1} parent=1 // pred_check_branch
      %18 = sbr.rel (0) target = $region17
    $region16: #{tpu_custom_call.1} parent=1 // pred_region
      _
    $region17: #{tpu_custom_call.1} parent=1 // pred_fallthru
      _
    // Predicated region
    $region18: #{tpu_custom_call.1} parent=1 // pred_check
      _
    $region19: #{tpu_custom_call.1} parent=1 // pred_check_branch
      %20 = sbr.rel (0) target = $region21
    $region20: #{tpu_custom_call.1} parent=1 // pred_region
      _
    $region21: #{tpu_custom_call.1} parent=1 // pred_fallthru
      _
    %v21 = vld [vmem:[%s0] sm:$0xff]
    %v22 = vld [vmem:[%s0 + $0x8] sm:$0xff]
    %v23 = vld [vmem:[%s0 + $0x10] sm:$0xff]
    %v24 = vld [vmem:[%s1] sm:$0xff]
    %v25 = vld [vmem:[%s1 + $0x8] sm:$0xff]
    %v26 = vld [vmem:[%s1 + $0x10] sm:$0xff]
    %v27 = vld [vmem:[%s1 + $0x18] sm:$0xff]
    %v28 = vld [vmem:[%s1 + $0x20] sm:$0xff]
    %v29 = vld [vmem:[%s1 + $0x28] sm:$0xff]
    %v30 = vld [vmem:[%s1 + $0x30] sm:$0xff]
    %v31 = vld [vmem:[%s1 + $0x38] sm:$0xff]
    %v32 = vld [vmem:[%s1 + $0x40] sm:$0xff]
    %v33 = vld [vmem:[%s1 + $0x48] sm:$0xff]
    %v34 = vld [vmem:[%s1 + $0x50] sm:$0xff]
    %v35 = vld [vmem:[%s1 + $0x58] sm:$0xff]
    %v36 = vld [vmem:[%s1 + $0x60] sm:$0xff]
    %v37 = vld [vmem:[%s1 + $0x68] sm:$0xff]
    %v38 = vld [vmem:[%s1 + $0x70] sm:$0xff]
    %v39 = vld [vmem:[%s1 + $0x78] sm:$0xff]
    %v40 = vld [vmem:[%s1 + $0x80] sm:$0xff]
    %v41 = vld [vmem:[%s1 + $0x88] sm:$0xff]
    %v42 = vld [vmem:[%s1 + $0x90] sm:$0xff]
    %v43 = vld [vmem:[%s1 + $0x98] sm:$0xff]
    %v44 = vld [vmem:[%s1 + $0xa0] sm:$0xff]
    %v45 = vld [vmem:[%s1 + $0xa8] sm:$0xff]
    %v46 = vld [vmem:[%s1 + $0xb0] sm:$0xff]
    %v47 = vld [vmem:[%s1 + $0xb8] sm:$0xff]
    %v48 = vld [vmem:[%s1 + $0xc0] sm:$0xff]
    %v49 = vld [vmem:[%s1 + $0xc8] sm:$0xff]
    %v50 = vld [vmem:[%s1 + $0xd0] sm:$0xff]
    %v51 = vld [vmem:[%s1 + $0xd8] sm:$0xff]
    %v52 = vld [vmem:[%s1 + $0xe0] sm:$0xff]
    %v53 = vld [vmem:[%s1 + $0xe8] sm:$0xff]
    %v54 = vld [vmem:[%s1 + $0xf0] sm:$0xff]
    %v55 = vld [vmem:[%s1 + $0xf8] sm:$0xff]
    %v56 = vld [vmem:[%s1 + $0x100] sm:$0xff]
    %v57 = vld [vmem:[%s1 + $0x108] sm:$0x3f]
    %v58 = vld [vmem:[%s2] sm:$0x1]
    %v60 = vlaneseq
    %v61 = vshrl.u32 %v60, 7
    %v62 = vsub.s32 0, %v61
    %v63 = vrot.slane %v58, %v62
    %vm65 = vcmask 113664
    %v67 = vsel %vm65, %v23, 0
    %vm69 = vcmask 1045504
    %v71 = vsel %vm69, %v57, 0
    %73 = vmatprep.subr.mxu0 0.0
    %74 = vmatpush1.msra.mxu0 %v24
    %75 = vmatprep.subr.mxu0 0.0
    %76 = vmatpush1.msra.mxu0 %v25
    %77 = vmatprep.subr.mxu0 0.0
    %78 = vmatpush1.msra.mxu0 %v26
    %79 = vmatprep.subr.mxu0 0.0
    %80 = vmatpush1.msra.mxu0 %v27
    %81 = vmatprep.subr.mxu0 0.0
    %82 = vmatpush1.msra.mxu0 %v28
    %83 = vmatprep.subr.mxu0 0.0
    %84 = vmatpush1.msra.mxu0 %v29
    %85 = vmatprep.subr.mxu0 0.0
    %86 = vmatpush1.msra.mxu0 %v30
    %87 = vmatprep.subr.mxu0 0.0
    %88 = vmatpush1.msra.mxu0 %v31
    %89 = vmatprep.subr.mxu0 0.0
    %90 = vmatpush1.msra.mxu0 %v32
    %91 = vmatprep.subr.mxu0 0.0
    %92 = vmatpush1.msra.mxu0 %v33
    %93 = vmatprep.subr.mxu0 0.0
    %94 = vmatpush1.msra.mxu0 %v34
    %95 = vmatprep.subr.mxu0 0.0
    %96 = vmatpush1.msra.mxu0 %v35
    %97 = vmatprep.subr.mxu0 0.0
    %98 = vmatpush1.msra.mxu0 %v36
    %99 = vmatprep.subr.mxu0 0.0
    %100 = vmatpush1.msra.mxu0 %v37
    %101 = vmatprep.subr.mxu0 0.0
    %102 = vmatpush1.msra.mxu0 %v38
    %103 = vmatprep.subr.mxu0 0.0
    %104 = vmatpush1.msra.mxu0 %v39
    %105 = vmatprep.subr.mxu0 0.0
    %106 = vmatpush1.msra.mxu0 %v40
    %107 = vmatprep.subr.mxu0 0.0
    %108 = vmatpush1.msra.mxu0 %v41
    %109 = vmatprep.subr.mxu0 0.0
    %110 = vmatpush1.msra.mxu0 %v42
    %111 = vmatprep.subr.mxu0 0.0
    %112 = vmatpush1.msra.mxu0 %v43
    %113 = vmatprep.subr.mxu0 0.0
    %114 = vmatpush1.msra.mxu0 %v44
    %115 = vmatprep.subr.mxu0 0.0
    %116 = vmatpush1.msra.mxu0 %v45
    %117 = vmatprep.subr.mxu0 0.0
    %118 = vmatpush1.msra.mxu0 %v46
    %119 = vmatprep.subr.mxu0 0.0
    %120 = vmatpush1.msra.mxu0 %v47
    %121 = vmatprep.subr.mxu0 0.0
    %122 = vmatpush1.msra.mxu0 %v48
    %123 = vmatprep.subr.mxu0 0.0
    %124 = vmatpush1.msra.mxu0 %v49
    %125 = vmatprep.subr.mxu0 0.0
    %126 = vmatpush1.msra.mxu0 %v50
    %127 = vmatprep.subr.mxu0 0.0
    %128 = vmatpush1.msra.mxu0 %v51
    %129 = vmatprep.subr.mxu0 0.0
    %130 = vmatpush1.msra.mxu0 %v52
    %131 = vmatprep.subr.mxu0 0.0
    %132 = vmatpush1.msra.mxu0 %v53
    %133 = vmatprep.subr.mxu0 0.0
    %134 = vmatpush1.msra.mxu0 %v54
    %135 = vmatprep.subr.mxu0 0.0
    %136 = vmatpush1.msra.mxu0 %v55
    %137 = vmatprep.mubr.f32.mxu0 %v22
    %138 = vmatmul.mubr.f32.gmra.mrb[0].mxu0 %v21
    %v139 = vpop.f32.mrb[0].mxu0
    %v140 = vadd.f32 %v63, %v139
    %v141 = vpop.f32.mrb[0].mxu0
    %142 = vdwg.mxu0
    %143 = vmatprep.subr.mxu0 0.0
    %144 = vmatpush1.msra.mxu0 %v56
    %145 = vmatprep.subr.mxu0 0.0
    %146 = vmatpush1.msra.mxu0 %v71
    %147 = vmatprep.subr.mxu0 0.0
    %148 = vmatpush1.msra.mxu0 0.0
    %149 = vmatprep.subr.mxu0 0.0
    %150 = vmatpush1.msra.mxu0 0.0
    %151 = vmatprep.subr.mxu0 0.0
    %152 = vmatpush1.msra.mxu0 0.0
    %153 = vmatprep.subr.mxu0 0.0
    %154 = vmatpush1.msra.mxu0 0.0
    %155 = vmatprep.subr.mxu0 0.0
    %156 = vmatpush1.msra.mxu0 0.0
    %157 = vmatprep.subr.mxu0 0.0
    %158 = vmatpush1.msra.mxu0 0.0
    %159 = vmatprep.subr.mxu0 0.0
    %160 = vmatpush1.msra.mxu0 0.0
    %161 = vmatprep.subr.mxu0 0.0
    %162 = vmatpush1.msra.mxu0 0.0
    %163 = vmatprep.subr.mxu0 0.0
    %164 = vmatpush1.msra.mxu0 0.0
    %165 = vmatprep.subr.mxu0 0.0
    %166 = vmatpush1.msra.mxu0 0.0
    %167 = vmatprep.subr.mxu0 0.0
    %168 = vmatpush1.msra.mxu0 0.0
    %169 = vmatprep.subr.mxu0 0.0
    %170 = vmatpush1.msra.mxu0 0.0
    %171 = vmatprep.subr.mxu0 0.0
    %172 = vmatpush1.msra.mxu0 0.0
    %173 = vmatprep.subr.mxu0 0.0
    %174 = vmatpush1.msra.mxu0 0.0
    %175 = vmatprep.subr.mxu0 0.0
    %176 = vmatpush1.msra.mxu0 0.0
    %177 = vmatprep.subr.mxu0 0.0
    %178 = vmatpush1.msra.mxu0 0.0
    %179 = vmatprep.subr.mxu0 0.0
    %180 = vmatpush1.msra.mxu0 0.0
    %181 = vmatprep.subr.mxu0 0.0
    %182 = vmatpush1.msra.mxu0 0.0
    %183 = vmatprep.subr.mxu0 0.0
    %184 = vmatpush1.msra.mxu0 0.0
    %185 = vmatprep.subr.mxu0 0.0
    %186 = vmatpush1.msra.mxu0 0.0
    %187 = vmatprep.subr.mxu0 0.0
    %188 = vmatpush1.msra.mxu0 0.0
    %189 = vmatprep.subr.mxu0 0.0
    %190 = vmatpush1.msra.mxu0 0.0
    %191 = vmatprep.subr.mxu0 0.0
    %192 = vmatpush1.msra.mxu0 0.0
    %193 = vmatprep.subr.mxu0 0.0
    %194 = vmatpush1.msra.mxu0 0.0
    %195 = vmatprep.subr.mxu0 0.0
    %196 = vmatpush1.msra.mxu0 0.0
    %197 = vmatprep.subr.mxu0 0.0
    %198 = vmatpush1.msra.mxu0 0.0
    %199 = vmatprep.subr.mxu0 0.0
    %200 = vmatpush1.msra.mxu0 0.0
    %201 = vmatprep.subr.mxu0 0.0
    %202 = vmatpush1.msra.mxu0 0.0
    %203 = vmatprep.subr.mxu0 0.0
    %204 = vmatpush1.msra.mxu0 0.0
    %205 = vmatprep.subr.mxu0 0.0
    %206 = vmatpush1.msra.mxu0 0.0
    %207 = vmatprep.mubr.f32.mxu0 0.0
    %208 = vmatmul.mubr.f32.gmra.mrb[0].mxu0 %v67
    %v209 = vpop.f32.mrb[0].mxu0
    %v210 = vadd.f32 %v140, %v209
    %v211 = vpop.f32.mrb[0].mxu0
    %212 = vdwg.mxu0
    %v213 = vmax.f32 %v210, 0.0
    %v214 = vld [vmem:[%s3] sm:$0xff]
    %v215 = vld [vmem:[%s3 + $0x8] sm:$0xff]
    %v216 = vld [vmem:[%s3 + $0x10] sm:$0xff]
    %v217 = vld [vmem:[%s3 + $0x18] sm:$0xff]
    %v218 = vld [vmem:[%s3 + $0x20] sm:$0xff]
    %v219 = vld [vmem:[%s3 + $0x28] sm:$0xff]
    %v220 = vld [vmem:[%s3 + $0x30] sm:$0xff]
    %v221 = vld [vmem:[%s3 + $0x38] sm:$0xff]
    %v222 = vld [vmem:[%s4] sm:$0x1]
    %v224 = vlaneseq
    %v225 = vshrl.u32 %v224, 7
    %v226 = vsub.s32 0, %v225
    %v227 = vrot.slane %v222, %v226
    %vm229 = vcmask 523264
    %v231 = vsel %vm229, %v213, 0
    %233 = vmatprep.subr.mxu0 0.0
    %234 = vmatpush1.msra.mxu0 %v214
    %235 = vmatprep.subr.mxu0 0.0
    %236 = vmatpush1.msra.mxu0 %v215
    %237 = vmatprep.subr.mxu0 0.0
    %238 = vmatpush1.msra.mxu0 %v216
    %239 = vmatprep.subr.mxu0 0.0
    %240 = vmatpush1.msra.mxu0 %v217
    %241 = vmatprep.subr.mxu0 0.0
    %242 = vmatpush1.msra.mxu0 %v218
    %243 = vmatprep.subr.mxu0 0.0
    %244 = vmatpush1.msra.mxu0 %v219
    %245 = vmatprep.subr.mxu0 0.0
    %246 = vmatpush1.msra.mxu0 %v220
    %247 = vmatprep.subr.mxu0 0.0
    %248 = vmatpush1.msra.mxu0 %v221
    %249 = vmatprep.subr.mxu0 0.0
    %250 = vmatpush1.msra.mxu0 0.0
    %251 = vmatprep.subr.mxu0 0.0
    %252 = vmatpush1.msra.mxu0 0.0
    %253 = vmatprep.subr.mxu0 0.0
    %254 = vmatpush1.msra.mxu0 0.0
    %255 = vmatprep.subr.mxu0 0.0
    %256 = vmatpush1.msra.mxu0 0.0
    %257 = vmatprep.subr.mxu0 0.0
    %258 = vmatpush1.msra.mxu0 0.0
    %259 = vmatprep.subr.mxu0 0.0
    %260 = vmatpush1.msra.mxu0 0.0
    %261 = vmatprep.subr.mxu0 0.0
    %262 = vmatpush1.msra.mxu0 0.0
    %263 = vmatprep.subr.mxu0 0.0
    %264 = vmatpush1.msra.mxu0 0.0
    %265 = vmatprep.subr.mxu0 0.0
    %266 = vmatpush1.msra.mxu0 0.0
    %267 = vmatprep.subr.mxu0 0.0
    %268 = vmatpush1.msra.mxu0 0.0
    %269 = vmatprep.subr.mxu0 0.0
    %270 = vmatpush1.msra.mxu0 0.0
    %271 = vmatprep.subr.mxu0 0.0
    %272 = vmatpush1.msra.mxu0 0.0
    %273 = vmatprep.subr.mxu0 0.0
    %274 = vmatpush1.msra.mxu0 0.0
    %275 = vmatprep.subr.mxu0 0.0
    %276 = vmatpush1.msra.mxu0 0.0
    %277 = vmatprep.subr.mxu0 0.0
    %278 = vmatpush1.msra.mxu0 0.0
    %279 = vmatprep.subr.mxu0 0.0
    %280 = vmatpush1.msra.mxu0 0.0
    %281 = vmatprep.subr.mxu0 0.0
    %282 = vmatpush1.msra.mxu0 0.0
    %283 = vmatprep.subr.mxu0 0.0
    %284 = vmatpush1.msra.mxu0 0.0
    %285 = vmatprep.subr.mxu0 0.0
    %286 = vmatpush1.msra.mxu0 0.0
    %287 = vmatprep.subr.mxu0 0.0
    %288 = vmatpush1.msra.mxu0 0.0
    %289 = vmatprep.subr.mxu0 0.0
    %290 = vmatpush1.msra.mxu0 0.0
    %291 = vmatprep.subr.mxu0 0.0
    %292 = vmatpush1.msra.mxu0 0.0
    %293 = vmatprep.subr.mxu0 0.0
    %294 = vmatpush1.msra.mxu0 0.0
    %295 = vmatprep.subr.mxu0 0.0
    %296 = vmatpush1.msra.mxu0 0.0
    %297 = vmatprep.mubr.f32.mxu0 0.0
    %298 = vmatmul.mubr.f32.gmra.mrb[0].mxu0 %v231
    %v299 = vpop.f32.mrb[0].mxu0
    %v300 = vadd.f32 %v227, %v299
    %v301 = vpop.f32.mrb[0].mxu0
    %302 = vdwg.mxu0
    %vm303 = vcmask 244736
    %304 = vst.msk [vmem:[#allocation2] sm:$0xff] %vm303, %v300
    // Predicated region
    $region22: #{tpu_custom_call.1} parent=1 // pred_check
      _
    $region23: #{tpu_custom_call.1} parent=1 // pred_check_branch
      %306 = sbr.rel (0) target = $region25
    $region24: #{tpu_custom_call.1} parent=1 // pred_region
      %s308 = ssub.s32 128, 128
      %309 = vsyncadd [#allocation3], %s308
      %s311 = sshll.u32 [#allocation2], 4
      %s312 = int_to_ptr.vmem [resolvable:$true] %s311
      %314 = dma.vmem_to_hbm [thread:$0]  %s312, 128, %s5, [#allocation3]
    $region25: #{tpu_custom_call.1} parent=1 // pred_fallthru
      _
    // Predicated region
    $region26: #{tpu_custom_call.1} parent=1 // pred_check
      _
    $region27: #{tpu_custom_call.1} parent=1 // pred_check_branch
      %316 = sbr.rel (0) target = $region29
    $region28: #{tpu_custom_call.1} parent=1 // pred_region
      %317 = dma.done [#allocation3], 128
    $region29: #{tpu_custom_call.1} parent=1 // pred_fallthru
      _
    %318 = vsyncpa [#allocation3], 1

</llo_original>
